<compile_context>
chip_gen: v7x
topology: tpu7x:2x2x1
jax: 0.10.0
libtpu: 0.0.40
codegen_flags: <defaults>
</compile_context>

<pallas_src>
import jax
import jax.numpy as jnp
from jax.experimental import pallas as pl
from jax.experimental.pallas import tpu as pltpu

STATE_DIM = 4        # CartPole-v0 observation_space.shape[0]
NUM_ACTIONS = 2      # CartPole-v0 action_space.n
HIDDEN = 256
PAD_A = 8            # sublane-aligned padded action count (2 -> 8)
LANE = 128           # lane width: batch tiles are multiples of this
MAX_TB = 2048        # max batch-tile (lanes); ~2 MiB of f32 hidden per tile


def _round_up(n, m):
    return ((n + m - 1) // m) * m


def _cdiv(a, b):
    return -(-a // b)


def _choose_tiling(batch):
    """Pick (tb, b_pad, n_tiles): tb multiple of 128, minimal padding,
    >= 2 tiles when possible so v7x's two TensorCores both get work."""
    b_ceil = _round_up(max(batch, 1), LANE)
    n_tiles = max(1, _cdiv(b_ceil, MAX_TB))
    if n_tiles == 1 and b_ceil >= 2 * LANE:
        n_tiles = 2                      # enable dual-TC sharding on v7x
    tb = _round_up(_cdiv(b_ceil, n_tiles), LANE)
    b_pad = n_tiles * tb
    return tb, b_pad, n_tiles


def policy_kernel(xT_ref, w1_ref, b1_ref, w2_ref, b2_ref, o_ref):
    xT = xT_ref[...]          # (STATE_DIM, tb)     f32, batch on lanes
    w1 = w1_ref[...]          # (HIDDEN, STATE_DIM) f32  (torch (out,in) layout)
    b1 = b1_ref[...]          # (HIDDEN, 1)         f32

    tb = xT.shape[1]

    # fc1 on the VPU: h^T = W1 @ x^T + b1 as 4 unrolled broadcast-FMAs.
    h = jnp.broadcast_to(b1, (HIDDEN, tb))
    for k in range(STATE_DIM):                       # static unroll, K = 4
        h = h + w1[:, k:k + 1] * xT[k:k + 1, :]
    h = jnp.maximum(h, 0.0)                          # ReLU

    # fc2 on the MXU: out^T = W2_pad @ h^T + b2 — narrow, lane-dense store.
    o_ref[...] = (
        jnp.dot(w2_ref[...], h, preferred_element_type=jnp.float32)
        + b2_ref[...]
    )


def prepare_params(w1, b1, w2, b2):
    """One-time layout prep (hoisted out of the per-step forward).

    Inputs use the torch Linear layout: w1 (HIDDEN, STATE_DIM), b1 (HIDDEN,),
    w2 (NUM_ACTIONS, HIDDEN), b2 (NUM_ACTIONS,)."""
    w1k = jnp.asarray(w1, jnp.float32)                              # (256, 4)
    b1k = jnp.asarray(b1, jnp.float32).reshape(HIDDEN, 1)           # (256, 1)
    w2k = jnp.pad(jnp.asarray(w2, jnp.float32),
                  ((0, PAD_A - NUM_ACTIONS), (0, 0)))               # (8, 256)
    b2k = jnp.pad(jnp.asarray(b2, jnp.float32).reshape(NUM_ACTIONS, 1),
                  ((0, PAD_A - NUM_ACTIONS), (0, 0)))               # (8, 1)
    return w1k, b1k, w2k, b2k


@jax.jit
def policy_forward(x, w1k, b1k, w2k, b2k):
    """x: (B, STATE_DIM) f32 -> (B, NUM_ACTIONS) f32."""
    B = x.shape[0]
    tb, b_pad, n_tiles = _choose_tiling(B)

    # Batch-on-lanes input; padded batch columns are garbage but sliced off.
    xT = jnp.pad(jnp.asarray(x, jnp.float32).T, ((0, 0), (0, b_pad - B)))

    out_T = pl.pallas_call(
        policy_kernel,
        out_shape=jax.ShapeDtypeStruct((PAD_A, b_pad), jnp.float32),
        grid=(n_tiles,),
        in_specs=[
            pl.BlockSpec((STATE_DIM, tb), lambda i: (0, i)),       # x^T tile
            pl.BlockSpec((HIDDEN, STATE_DIM), lambda i: (0, 0)),   # w1 resident
            pl.BlockSpec((HIDDEN, 1), lambda i: (0, 0)),           # b1 resident
            pl.BlockSpec((PAD_A, HIDDEN), lambda i: (0, 0)),       # w2 resident
            pl.BlockSpec((PAD_A, 1), lambda i: (0, 0)),            # b2 resident
        ],
        out_specs=pl.BlockSpec((PAD_A, tb), lambda i: (0, i)),
        compiler_params=pltpu.CompilerParams(
            dimension_semantics=("parallel",)),
    )(xT, w1k, b1k, w2k, b2k)

    # Drop padded action rows / padded batch columns; fused under jit.
    return out_T[:NUM_ACTIONS, :B].T


def init_params(key):
    # Deterministic init matching the PyTorch Linear (out, in) layout.
    k1, k2, k3, k4 = jax.random.split(key, 4)
    bound1 = 1.0 / jnp.sqrt(jnp.float32(STATE_DIM))
    bound2 = 1.0 / jnp.sqrt(jnp.float32(HIDDEN))
    w1 = jax.random.uniform(k1, (HIDDEN, STATE_DIM), jnp.float32, -bound1, bound1)
    b1 = jax.random.uniform(k2, (HIDDEN,), jnp.float32, -bound1, bound1)
    w2 = jax.random.uniform(k3, (NUM_ACTIONS, HIDDEN), jnp.float32, -bound2, bound2)
    b2 = jax.random.uniform(k4, (NUM_ACTIONS,), jnp.float32, -bound2, bound2)
    return w1, b1, w2, b2


if __name__ == "__main__":
    key = jax.random.PRNGKey(0)
    kx, kp = jax.random.split(key)

    B = 8  # small batch of CartPole states
    x = jax.random.normal(kx, (B, STATE_DIM), jnp.float32)
    w1, b1, w2, b2 = init_params(kp)

    # One-time weight layout prep (padding/transposes hoisted out of forward).
    params = prepare_params(w1, b1, w2, b2)

    out = policy_forward(x, *params)
    out = jax.block_until_ready(out)

    # Reference check in plain JAX (torch semantics: x @ W^T + b).
    ref = jnp.maximum(x @ w1.T + b1, 0.0) @ w2.T + b2
    assert out.shape == (B, NUM_ACTIONS)
    assert jnp.allclose(out, ref, atol=1e-5, rtol=1e-5)

    print("KERNEL_OK")
</pallas_src>

<mosaic_0001>
module attributes {stable_mosaic.version = 11 : i64} {
  func.func @policy_kernel(%arg0: i32, %arg1: memref<4x128xf32, #tpu.memory_space<vmem>>, %arg2: memref<256x4xf32, #tpu.memory_space<vmem>>, %arg3: memref<256x1xf32, #tpu.memory_space<vmem>>, %arg4: memref<8x256xf32, #tpu.memory_space<vmem>>, %arg5: memref<8x1xf32, #tpu.memory_space<vmem>>, %arg6: memref<8x128xf32, #tpu.memory_space<vmem>>) attributes {dimension_semantics = [#tpu.dimension_semantics<parallel>], iteration_bounds = array<i64: 1>, scalar_prefetch = 0 : i64, scratch_operands = 0 : i64, tpu.core_type = #tpu.core_type<tc>, window_params = [{transform_indices = @transform_0, window_bounds = array<i64: 4, 128>}, {pipeline_mode = #tpu.pipeline_mode<synchronous>, transform_indices = @transform_1, window_bounds = array<i64: 256, 4>}, {pipeline_mode = #tpu.pipeline_mode<synchronous>, transform_indices = @transform_2, window_bounds = array<i64: 256, 1>}, {pipeline_mode = #tpu.pipeline_mode<synchronous>, transform_indices = @transform_3, window_bounds = array<i64: 8, 256>}, {pipeline_mode = #tpu.pipeline_mode<synchronous>, transform_indices = @transform_4, window_bounds = array<i64: 8, 1>}, {transform_indices = @transform_5, window_bounds = array<i64: 8, 128>}]} {
    %c0 = arith.constant 0 : index
    %c0_0 = arith.constant 0 : index
    %0 = vector.load %arg1[%c0, %c0_0] : memref<4x128xf32, #tpu.memory_space<vmem>>, vector<4x128xf32>
    %c0_1 = arith.constant 0 : index
    %c0_2 = arith.constant 0 : index
    %1 = vector.load %arg2[%c0_1, %c0_2] : memref<256x4xf32, #tpu.memory_space<vmem>>, vector<256x4xf32>
    %c0_3 = arith.constant 0 : index
    %c0_4 = arith.constant 0 : index
    %2 = vector.load %arg3[%c0_3, %c0_4] : memref<256x1xf32, #tpu.memory_space<vmem>>, vector<256x1xf32>
    %3 = vector.shape_cast %2 : vector<256x1xf32> to vector<256x1xf32>
    %4 = vector.broadcast %3 : vector<256x1xf32> to vector<256x128xf32>
    %5 = vector.extract_strided_slice %1 {offsets = [0, 0], sizes = [256, 1], strides = [1, 1]} : vector<256x4xf32> to vector<256x1xf32>
    %6 = vector.extract_strided_slice %0 {offsets = [0, 0], sizes = [1, 128], strides = [1, 1]} : vector<4x128xf32> to vector<1x128xf32>
    %7 = vector.broadcast %5 : vector<256x1xf32> to vector<256x128xf32>
    %8 = vector.broadcast %6 : vector<1x128xf32> to vector<256x128xf32>
    %9 = arith.mulf %7, %8 : vector<256x128xf32>
    %10 = arith.addf %4, %9 : vector<256x128xf32>
    %11 = vector.extract_strided_slice %1 {offsets = [0, 1], sizes = [256, 1], strides = [1, 1]} : vector<256x4xf32> to vector<256x1xf32>
    %12 = vector.extract_strided_slice %0 {offsets = [1, 0], sizes = [1, 128], strides = [1, 1]} : vector<4x128xf32> to vector<1x128xf32>
    %13 = vector.broadcast %11 : vector<256x1xf32> to vector<256x128xf32>
    %14 = vector.broadcast %12 : vector<1x128xf32> to vector<256x128xf32>
    %15 = arith.mulf %13, %14 : vector<256x128xf32>
    %16 = arith.addf %10, %15 : vector<256x128xf32>
    %17 = vector.extract_strided_slice %1 {offsets = [0, 2], sizes = [256, 1], strides = [1, 1]} : vector<256x4xf32> to vector<256x1xf32>
    %18 = vector.extract_strided_slice %0 {offsets = [2, 0], sizes = [1, 128], strides = [1, 1]} : vector<4x128xf32> to vector<1x128xf32>
    %19 = vector.broadcast %17 : vector<256x1xf32> to vector<256x128xf32>
    %20 = vector.broadcast %18 : vector<1x128xf32> to vector<256x128xf32>
    %21 = arith.mulf %19, %20 : vector<256x128xf32>
    %22 = arith.addf %16, %21 : vector<256x128xf32>
    %23 = vector.extract_strided_slice %1 {offsets = [0, 3], sizes = [256, 1], strides = [1, 1]} : vector<256x4xf32> to vector<256x1xf32>
    %24 = vector.extract_strided_slice %0 {offsets = [3, 0], sizes = [1, 128], strides = [1, 1]} : vector<4x128xf32> to vector<1x128xf32>
    %25 = vector.broadcast %23 : vector<256x1xf32> to vector<256x128xf32>
    %26 = vector.broadcast %24 : vector<1x128xf32> to vector<256x128xf32>
    %27 = arith.mulf %25, %26 : vector<256x128xf32>
    %28 = arith.addf %22, %27 : vector<256x128xf32>
    %cst = arith.constant 0.000000e+00 : f32
    %29 = vector.broadcast %cst : f32 to vector<256x128xf32>
    %30 = arith.maximumf %28, %29 : vector<256x128xf32>
    %c0_5 = arith.constant 0 : index
    %c0_6 = arith.constant 0 : index
    %31 = vector.load %arg4[%c0_5, %c0_6] : memref<8x256xf32, #tpu.memory_space<vmem>>, vector<8x256xf32>
    %cst_7 = arith.constant dense<0.000000e+00> : vector<8x128xf32>
    %32 = tpu.matmul %31, %30, %cst_7 {dimension_numbers = #tpu.dot_dimension_numbers<[1], [0], [0], [1], [0, 0, 1, 1], [], []>} : vector<8x256xf32>, vector<256x128xf32>, vector<8x128xf32> -> vector<8x128xf32>
    %c0_8 = arith.constant 0 : index
    %c0_9 = arith.constant 0 : index
    %33 = vector.load %arg5[%c0_8, %c0_9] : memref<8x1xf32, #tpu.memory_space<vmem>>, vector<8x1xf32>
    %34 = vector.broadcast %33 : vector<8x1xf32> to vector<8x128xf32>
    %35 = arith.addf %32, %34 : vector<8x128xf32>
    %c0_10 = arith.constant 0 : index
    %c0_11 = arith.constant 0 : index
    %36 = vector.load %arg6[%c0_10, %c0_11] : memref<8x128xf32, #tpu.memory_space<vmem>>, vector<8x128xf32>
    tpu.vector_store %arg6[%c0_10, %c0_11], %35 {strides = array<i32>} : memref<8x128xf32, #tpu.memory_space<vmem>>, vector<8x128xf32>,
    return
  }
  func.func @transform_0(%arg0: i32) -> (i32, i32) {
    %c0_i32 = arith.constant 0 : i32
    %c0_i32_0 = arith.constant 0 : i32
    return %c0_i32, %arg0 : i32, i32
  }
  func.func @transform_1(%arg0: i32) -> (i32, i32) {
    %c0_i32 = arith.constant 0 : i32
    %c0_i32_0 = arith.constant 0 : i32
    %c0_i32_1 = arith.constant 0 : i32
    return %c0_i32, %c0_i32_0 : i32, i32
  }
  func.func @transform_2(%arg0: i32) -> (i32, i32) {
    %c0_i32 = arith.constant 0 : i32
    %c0_i32_0 = arith.constant 0 : i32
    %c0_i32_1 = arith.constant 0 : i32
    return %c0_i32, %c0_i32_0 : i32, i32
  }
  func.func @transform_3(%arg0: i32) -> (i32, i32) {
    %c0_i32 = arith.constant 0 : i32
    %c0_i32_0 = arith.constant 0 : i32
    %c0_i32_1 = arith.constant 0 : i32
    return %c0_i32, %c0_i32_0 : i32, i32
  }
  func.func @transform_4(%arg0: i32) -> (i32, i32) {
    %c0_i32 = arith.constant 0 : i32
    %c0_i32_0 = arith.constant 0 : i32
    %c0_i32_1 = arith.constant 0 : i32
    return %c0_i32, %c0_i32_0 : i32, i32
  }
  func.func @transform_5(%arg0: i32) -> (i32, i32) {
    %c0_i32 = arith.constant 0 : i32
    %c0_i32_0 = arith.constant 0 : i32
    return %c0_i32, %arg0 : i32, i32
  }
}

</mosaic_0001>

<llo_original>
// kernel: policy_forward.1
$region0: #{policy_forward.1}
  #allocation0 [shape = 'u32[]', space=smem, size = 0x4, offset = 0x4, fixed_abs, tag = 'smem constant byte address 0x4 - core index']
  #allocation1 [shape = 'u32[144,128]{1,0:T(1,128)}', space=vmem, size = 0x12000, scoped, tag = 'internal scratch']
  %s0 = inlined_call_operand.vmem [shape: f32[4,128], index: 0, kind: input, shape index: {}]
  %s1 = inlined_call_operand.vmem [shape: f32[256,4], index: 1, kind: input, shape index: {}]
  %s2 = inlined_call_operand.vmem [shape: f32[256,1], index: 2, kind: input, shape index: {}]
  %s3 = inlined_call_operand.vmem [shape: f32[8,256], index: 3, kind: input, shape index: {}]
  %s4 = inlined_call_operand.vmem [shape: f32[8,1], index: 4, kind: input, shape index: {}]
  %s5 = inlined_call_operand.vmem [shape: f32[8,128], index: 5, kind: output, shape index: {}]
  %s6 = sld [smem:[#allocation0]]
  $region30: #{policy_forward.1} parent=0
    _
  %s8 = ssub.s32 1, %s6
  %s9 = scalar_select 0, %s8, %s6
  // Predicated region
  $region2: #{policy_forward.1} parent=0 // pred_check
    _
  $region3: #{policy_forward.1} parent=0 // pred_check_branch
    %11 = sbr.rel (0) target = $region5
  $region4: #{policy_forward.1} parent=0 // pred_region
    _
  $region5: #{policy_forward.1} parent=0 // pred_fallthru
    _
  // Predicated region
  $region6: #{policy_forward.1} parent=0 // pred_check
    _
  $region7: #{policy_forward.1} parent=0 // pred_check_branch
    %13 = sbr.rel (0) target = $region9
  $region8: #{policy_forward.1} parent=0 // pred_region
    _
  $region9: #{policy_forward.1} parent=0 // pred_fallthru
    _
  // Predicated region
  $region10: #{policy_forward.1} parent=0 // pred_check
    _
  $region11: #{policy_forward.1} parent=0 // pred_check_branch
    %15 = sbr.rel (0) target = $region13
  $region12: #{policy_forward.1} parent=0 // pred_region
    _
  $region13: #{policy_forward.1} parent=0 // pred_fallthru
    _
  // Predicated region
  $region14: #{policy_forward.1} parent=0 // pred_check
    _
  $region15: #{policy_forward.1} parent=0 // pred_check_branch
    %17 = sbr.rel (0) target = $region17
  $region16: #{policy_forward.1} parent=0 // pred_region
    _
  $region17: #{policy_forward.1} parent=0 // pred_fallthru
    _
  // Predicated region
  $region18: #{policy_forward.1} parent=0 // pred_check
    _
  $region19: #{policy_forward.1} parent=0 // pred_check_branch
    %19 = sbr.rel (0) target = $region21
  $region20: #{policy_forward.1} parent=0 // pred_region
    _
  $region21: #{policy_forward.1} parent=0 // pred_fallthru
    _
  %v20 = vld [vmem:[%s0] sm:$0xf]
  %v21 = vld [vmem:[%s1] sm:$0xff]
  %v22 = vld [vmem:[%s1 + $0x8] sm:$0xff]
  %v23 = vld [vmem:[%s1 + $0x10] sm:$0xff]
  %v24 = vld [vmem:[%s1 + $0x18] sm:$0xff]
  %v25 = vld [vmem:[%s1 + $0x20] sm:$0xff]
  %v26 = vld [vmem:[%s1 + $0x28] sm:$0xff]
  %v27 = vld [vmem:[%s1 + $0x30] sm:$0xff]
  %v28 = vld [vmem:[%s1 + $0x38] sm:$0xff]
  %v29 = vld [vmem:[%s1 + $0x40] sm:$0xff]
  %v30 = vld [vmem:[%s1 + $0x48] sm:$0xff]
  %v31 = vld [vmem:[%s1 + $0x50] sm:$0xff]
  %v32 = vld [vmem:[%s1 + $0x58] sm:$0xff]
  %v33 = vld [vmem:[%s1 + $0x60] sm:$0xff]
  %v34 = vld [vmem:[%s1 + $0x68] sm:$0xff]
  %v35 = vld [vmem:[%s1 + $0x70] sm:$0xff]
  %v36 = vld [vmem:[%s1 + $0x78] sm:$0xff]
  %v37 = vld [vmem:[%s1 + $0x80] sm:$0xff]
  %v38 = vld [vmem:[%s1 + $0x88] sm:$0xff]
  %v39 = vld [vmem:[%s1 + $0x90] sm:$0xff]
  %v40 = vld [vmem:[%s1 + $0x98] sm:$0xff]
  %v41 = vld [vmem:[%s1 + $0xa0] sm:$0xff]
  %v42 = vld [vmem:[%s1 + $0xa8] sm:$0xff]
  %v43 = vld [vmem:[%s1 + $0xb0] sm:$0xff]
  %v44 = vld [vmem:[%s1 + $0xb8] sm:$0xff]
  %v45 = vld [vmem:[%s1 + $0xc0] sm:$0xff]
  %v46 = vld [vmem:[%s1 + $0xc8] sm:$0xff]
  %v47 = vld [vmem:[%s1 + $0xd0] sm:$0xff]
  %v48 = vld [vmem:[%s1 + $0xd8] sm:$0xff]
  %v49 = vld [vmem:[%s1 + $0xe0] sm:$0xff]
  %v50 = vld [vmem:[%s1 + $0xe8] sm:$0xff]
  %v51 = vld [vmem:[%s1 + $0xf0] sm:$0xff]
  %v52 = vld [vmem:[%s1 + $0xf8] sm:$0xff]
  %v53 = vld [vmem:[%s2] sm:$0xff]
  %v54 = vld [vmem:[%s2 + $0x8] sm:$0xff]
  %v55 = vld [vmem:[%s2 + $0x10] sm:$0xff]
  %v56 = vld [vmem:[%s2 + $0x18] sm:$0xff]
  %v57 = vld [vmem:[%s2 + $0x20] sm:$0xff]
  %v58 = vld [vmem:[%s2 + $0x28] sm:$0xff]
  %v59 = vld [vmem:[%s2 + $0x30] sm:$0xff]
  %v60 = vld [vmem:[%s2 + $0x38] sm:$0xff]
  %v61 = vld [vmem:[%s2 + $0x40] sm:$0xff]
  %v62 = vld [vmem:[%s2 + $0x48] sm:$0xff]
  %v63 = vld [vmem:[%s2 + $0x50] sm:$0xff]
  %v64 = vld [vmem:[%s2 + $0x58] sm:$0xff]
  %v65 = vld [vmem:[%s2 + $0x60] sm:$0xff]
  %v66 = vld [vmem:[%s2 + $0x68] sm:$0xff]
  %v67 = vld [vmem:[%s2 + $0x70] sm:$0xff]
  %v68 = vld [vmem:[%s2 + $0x78] sm:$0xff]
  %v69 = vld [vmem:[%s2 + $0x80] sm:$0xff]
  %v70 = vld [vmem:[%s2 + $0x88] sm:$0xff]
  %v71 = vld [vmem:[%s2 + $0x90] sm:$0xff]
  %v72 = vld [vmem:[%s2 + $0x98] sm:$0xff]
  %v73 = vld [vmem:[%s2 + $0xa0] sm:$0xff]
  %v74 = vld [vmem:[%s2 + $0xa8] sm:$0xff]
  %v75 = vld [vmem:[%s2 + $0xb0] sm:$0xff]
  %v76 = vld [vmem:[%s2 + $0xb8] sm:$0xff]
  %v77 = vld [vmem:[%s2 + $0xc0] sm:$0xff]
  %v78 = vld [vmem:[%s2 + $0xc8] sm:$0xff]
  %v79 = vld [vmem:[%s2 + $0xd0] sm:$0xff]
  %v80 = vld [vmem:[%s2 + $0xd8] sm:$0xff]
  %v81 = vld [vmem:[%s2 + $0xe0] sm:$0xff]
  %v82 = vld [vmem:[%s2 + $0xe8] sm:$0xff]
  %v83 = vld [vmem:[%s2 + $0xf0] sm:$0xff]
  %v84 = vld [vmem:[%s2 + $0xf8] sm:$0xff]
  %86 = vset.pattern.permute.xlu0 0
  %87 = vperm.xlu0 %86, %v53
  %v88 = vpop.permute.xlu0 %87
  %91 = vset.pattern.permute.xlu0 0
  %92 = vperm.xlu0 %91, %v54
  %v93 = vpop.permute.xlu0 %92
  %96 = vset.pattern.permute.xlu0 0
  %97 = vperm.xlu0 %96, %v55
  %v98 = vpop.permute.xlu0 %97
  %101 = vset.pattern.permute.xlu0 0
  %102 = vperm.xlu0 %101, %v56
  %v103 = vpop.permute.xlu0 %102
  %106 = vset.pattern.permute.xlu0 0
  %107 = vperm.xlu0 %106, %v57
  %v108 = vpop.permute.xlu0 %107
  %111 = vset.pattern.permute.xlu0 0
  %112 = vperm.xlu0 %111, %v58
  %v113 = vpop.permute.xlu0 %112
  %116 = vset.pattern.permute.xlu0 0
  %117 = vperm.xlu0 %116, %v59
  %v118 = vpop.permute.xlu0 %117
  %121 = vset.pattern.permute.xlu0 0
  %122 = vperm.xlu0 %121, %v60
  %v123 = vpop.permute.xlu0 %122
  %126 = vset.pattern.permute.xlu0 0
  %127 = vperm.xlu0 %126, %v61
  %v128 = vpop.permute.xlu0 %127
  %131 = vset.pattern.permute.xlu0 0
  %132 = vperm.xlu0 %131, %v62
  %v133 = vpop.permute.xlu0 %132
  %136 = vset.pattern.permute.xlu0 0
  %137 = vperm.xlu0 %136, %v63
  %v138 = vpop.permute.xlu0 %137
  %141 = vset.pattern.permute.xlu0 0
  %142 = vperm.xlu0 %141, %v64
  %v143 = vpop.permute.xlu0 %142
  %146 = vset.pattern.permute.xlu0 0
  %147 = vperm.xlu0 %146, %v65
  %v148 = vpop.permute.xlu0 %147
  %151 = vset.pattern.permute.xlu0 0
  %152 = vperm.xlu0 %151, %v66
  %v153 = vpop.permute.xlu0 %152
  %156 = vset.pattern.permute.xlu0 0
  %157 = vperm.xlu0 %156, %v67
  %v158 = vpop.permute.xlu0 %157
  %161 = vset.pattern.permute.xlu0 0
  %162 = vperm.xlu0 %161, %v68
  %v163 = vpop.permute.xlu0 %162
  %166 = vset.pattern.permute.xlu0 0
  %167 = vperm.xlu0 %166, %v69
  %v168 = vpop.permute.xlu0 %167
  %171 = vset.pattern.permute.xlu0 0
  %172 = vperm.xlu0 %171, %v70
  %v173 = vpop.permute.xlu0 %172
  %176 = vset.pattern.permute.xlu0 0
  %177 = vperm.xlu0 %176, %v71
  %v178 = vpop.permute.xlu0 %177
  %181 = vset.pattern.permute.xlu0 0
  %182 = vperm.xlu0 %181, %v72
  %v183 = vpop.permute.xlu0 %182
  %186 = vset.pattern.permute.xlu0 0
  %187 = vperm.xlu0 %186, %v73
  %v188 = vpop.permute.xlu0 %187
  %191 = vset.pattern.permute.xlu0 0
  %192 = vperm.xlu0 %191, %v74
  %v193 = vpop.permute.xlu0 %192
  %196 = vset.pattern.permute.xlu0 0
  %197 = vperm.xlu0 %196, %v75
  %v198 = vpop.permute.xlu0 %197
  %201 = vset.pattern.permute.xlu0 0
  %202 = vperm.xlu0 %201, %v76
  %v203 = vpop.permute.xlu0 %202
  %206 = vset.pattern.permute.xlu0 0
  %207 = vperm.xlu0 %206, %v77
  %v208 = vpop.permute.xlu0 %207
  %211 = vset.pattern.permute.xlu0 0
  %212 = vperm.xlu0 %211, %v78
  %v213 = vpop.permute.xlu0 %212
  %216 = vset.pattern.permute.xlu0 0
  %217 = vperm.xlu0 %216, %v79
  %v218 = vpop.permute.xlu0 %217
  %221 = vset.pattern.permute.xlu0 0
  %222 = vperm.xlu0 %221, %v80
  %v223 = vpop.permute.xlu0 %222
  %226 = vset.pattern.permute.xlu0 0
  %227 = vperm.xlu0 %226, %v81
  %v228 = vpop.permute.xlu0 %227
  %231 = vset.pattern.permute.xlu0 0
  %232 = vperm.xlu0 %231, %v82
  %v233 = vpop.permute.xlu0 %232
  %236 = vset.pattern.permute.xlu0 0
  %237 = vperm.xlu0 %236, %v83
  %v238 = vpop.permute.xlu0 %237
  %241 = vset.pattern.permute.xlu0 0
  %242 = vperm.xlu0 %241, %v84
  %v243 = vpop.permute.xlu0 %242
  %246 = vset.pattern.permute.xlu0 0
  %247 = vperm.xlu0 %246, %v21
  %v248 = vpop.permute.xlu0 %247
  %251 = vset.pattern.permute.xlu0 0
  %252 = vperm.xlu0 %251, %v22
  %v253 = vpop.permute.xlu0 %252
  %256 = vset.pattern.permute.xlu0 0
  %257 = vperm.xlu0 %256, %v23
  %v258 = vpop.permute.xlu0 %257
  %261 = vset.pattern.permute.xlu0 0
  %262 = vperm.xlu0 %261, %v24
  %v263 = vpop.permute.xlu0 %262
  %266 = vset.pattern.permute.xlu0 0
  %267 = vperm.xlu0 %266, %v25
  %v268 = vpop.permute.xlu0 %267
  %271 = vset.pattern.permute.xlu0 0
  %272 = vperm.xlu0 %271, %v26
  %v273 = vpop.permute.xlu0 %272
  %276 = vset.pattern.permute.xlu0 0
  %277 = vperm.xlu0 %276, %v27
  %v278 = vpop.permute.xlu0 %277
  %281 = vset.pattern.permute.xlu0 0
  %282 = vperm.xlu0 %281, %v28
  %v283 = vpop.permute.xlu0 %282
  %286 = vset.pattern.permute.xlu0 0
  %287 = vperm.xlu0 %286, %v29
  %v288 = vpop.permute.xlu0 %287
  %291 = vset.pattern.permute.xlu0 0
  %292 = vperm.xlu0 %291, %v30
  %v293 = vpop.permute.xlu0 %292
  %296 = vset.pattern.permute.xlu0 0
  %297 = vperm.xlu0 %296, %v31
  %v298 = vpop.permute.xlu0 %297
  %301 = vset.pattern.permute.xlu0 0
  %302 = vperm.xlu0 %301, %v32
  %v303 = vpop.permute.xlu0 %302
  %306 = vset.pattern.permute.xlu0 0
  %307 = vperm.xlu0 %306, %v33
  %v308 = vpop.permute.xlu0 %307
  %311 = vset.pattern.permute.xlu0 0
  %312 = vperm.xlu0 %311, %v34
  %v313 = vpop.permute.xlu0 %312
  %316 = vset.pattern.permute.xlu0 0
  %317 = vperm.xlu0 %316, %v35
  %v318 = vpop.permute.xlu0 %317
  %321 = vset.pattern.permute.xlu0 0
  %322 = vperm.xlu0 %321, %v36
  %v323 = vpop.permute.xlu0 %322
  %326 = vset.pattern.permute.xlu0 0
  %327 = vperm.xlu0 %326, %v37
  %v328 = vpop.permute.xlu0 %327
  %331 = vset.pattern.permute.xlu0 0
  %332 = vperm.xlu0 %331, %v38
  %v333 = vpop.permute.xlu0 %332
  %336 = vset.pattern.permute.xlu0 0
  %337 = vperm.xlu0 %336, %v39
  %v338 = vpop.permute.xlu0 %337
  %341 = vset.pattern.permute.xlu0 0
  %342 = vperm.xlu0 %341, %v40
  %v343 = vpop.permute.xlu0 %342
  %346 = vset.pattern.permute.xlu0 0
  %347 = vperm.xlu0 %346, %v41
  %v348 = vpop.permute.xlu0 %347
  %351 = vset.pattern.permute.xlu0 0
  %352 = vperm.xlu0 %351, %v42
  %v353 = vpop.permute.xlu0 %352
  %356 = vset.pattern.permute.xlu0 0
  %357 = vperm.xlu0 %356, %v43
  %v358 = vpop.permute.xlu0 %357
  %361 = vset.pattern.permute.xlu0 0
  %362 = vperm.xlu0 %361, %v44
  %v363 = vpop.permute.xlu0 %362
  %366 = vset.pattern.permute.xlu0 0
  %367 = vperm.xlu0 %366, %v45
  %v368 = vpop.permute.xlu0 %367
  %371 = vset.pattern.permute.xlu0 0
  %372 = vperm.xlu0 %371, %v46
  %v373 = vpop.permute.xlu0 %372
  %376 = vset.pattern.permute.xlu0 0
  %377 = vperm.xlu0 %376, %v47
  %v378 = vpop.permute.xlu0 %377
  %381 = vset.pattern.permute.xlu0 0
  %382 = vperm.xlu0 %381, %v48
  %v383 = vpop.permute.xlu0 %382
  %386 = vset.pattern.permute.xlu0 0
  %387 = vperm.xlu0 %386, %v49
  %v388 = vpop.permute.xlu0 %387
  %391 = vset.pattern.permute.xlu0 0
  %392 = vperm.xlu0 %391, %v50
  %v393 = vpop.permute.xlu0 %392
  %396 = vset.pattern.permute.xlu0 0
  %397 = vperm.xlu0 %396, %v51
  %v398 = vpop.permute.xlu0 %397
  %401 = vset.pattern.permute.xlu0 0
  %402 = vperm.xlu0 %401, %v52
  %v403 = vpop.permute.xlu0 %402
  %v405 = vlaneseq
  %v406 = vshrl.u32 %v405, 7
  %v407 = vsub.s32 0, %v406
  %v408 = vrot.slane %v20, %v407
  %v409 = vmul.f32 %v248, %v408
  %v410 = vmul.f32 %v253, %v408
  %v411 = vmul.f32 %v258, %v408
  %v412 = vmul.f32 %v263, %v408
  %v413 = vmul.f32 %v268, %v408
  %v414 = vmul.f32 %v273, %v408
  %v415 = vmul.f32 %v278, %v408
  %v416 = vmul.f32 %v283, %v408
  %v417 = vmul.f32 %v288, %v408
  %v418 = vmul.f32 %v293, %v408
  %v419 = vmul.f32 %v298, %v408
  %v420 = vmul.f32 %v303, %v408
  %v421 = vmul.f32 %v308, %v408
  %v422 = vmul.f32 %v313, %v408
  %v423 = vmul.f32 %v318, %v408
  %v424 = vmul.f32 %v323, %v408
  %v425 = vmul.f32 %v328, %v408
  %v426 = vmul.f32 %v333, %v408
  %v427 = vmul.f32 %v338, %v408
  %v428 = vmul.f32 %v343, %v408
  %v429 = vmul.f32 %v348, %v408
  %v430 = vmul.f32 %v353, %v408
  %v431 = vmul.f32 %v358, %v408
  %v432 = vmul.f32 %v363, %v408
  %v433 = vmul.f32 %v368, %v408
  %v434 = vmul.f32 %v373, %v408
  %v435 = vmul.f32 %v378, %v408
  %v436 = vmul.f32 %v383, %v408
  %v437 = vmul.f32 %v388, %v408
  %v438 = vmul.f32 %v393, %v408
  %v439 = vmul.f32 %v398, %v408
  %v440 = vmul.f32 %v403, %v408
  %v441 = vadd.f32 %v88, %v409
  %v442 = vadd.f32 %v93, %v410
  %v443 = vadd.f32 %v98, %v411
  %v444 = vadd.f32 %v103, %v412
  %v445 = vadd.f32 %v108, %v413
  %v446 = vadd.f32 %v113, %v414
  %v447 = vadd.f32 %v118, %v415
  %v448 = vadd.f32 %v123, %v416
  %v449 = vadd.f32 %v128, %v417
  %v450 = vadd.f32 %v133, %v418
  %v451 = vadd.f32 %v138, %v419
  %v452 = vadd.f32 %v143, %v420
  %v453 = vadd.f32 %v148, %v421
  %v454 = vadd.f32 %v153, %v422
  %v455 = vadd.f32 %v158, %v423
  %v456 = vadd.f32 %v163, %v424
  %v457 = vadd.f32 %v168, %v425
  %v458 = vadd.f32 %v173, %v426
  %v459 = vadd.f32 %v178, %v427
  %v460 = vadd.f32 %v183, %v428
  %v461 = vadd.f32 %v188, %v429
  %v462 = vadd.f32 %v193, %v430
  %v463 = vadd.f32 %v198, %v431
  %v464 = vadd.f32 %v203, %v432
  %v465 = vadd.f32 %v208, %v433
  %v466 = vadd.f32 %v213, %v434
  %v467 = vadd.f32 %v218, %v435
  %v468 = vadd.f32 %v223, %v436
  %v469 = vadd.f32 %v228, %v437
  %v470 = vadd.f32 %v233, %v438
  %v471 = vadd.f32 %v238, %v439
  %v472 = vadd.f32 %v243, %v440
  %473 = vset.pattern.permute.xlu0 1
  %474 = vperm.xlu0 %473, %v21
  %v475 = vpop.permute.xlu0 %474
  %477 = vset.pattern.permute.xlu0 1
  %478 = vperm.xlu0 %477, %v22
  %v479 = vpop.permute.xlu0 %478
  %481 = vset.pattern.permute.xlu0 1
  %482 = vperm.xlu0 %481, %v23
  %v483 = vpop.permute.xlu0 %482
  %485 = vset.pattern.permute.xlu0 1
  %486 = vperm.xlu0 %485, %v24
  %v487 = vpop.permute.xlu0 %486
  %489 = vset.pattern.permute.xlu0 1
  %490 = vperm.xlu0 %489, %v25
  %v491 = vpop.permute.xlu0 %490
  %493 = vset.pattern.permute.xlu0 1
  %494 = vperm.xlu0 %493, %v26
  %v495 = vpop.permute.xlu0 %494
  %497 = vset.pattern.permute.xlu0 1
  %498 = vperm.xlu0 %497, %v27
  %v499 = vpop.permute.xlu0 %498
  %501 = vset.pattern.permute.xlu0 1
  %502 = vperm.xlu0 %501, %v28
  %v503 = vpop.permute.xlu0 %502
  %505 = vset.pattern.permute.xlu0 1
  %506 = vperm.xlu0 %505, %v29
  %v507 = vpop.permute.xlu0 %506
  %509 = vset.pattern.permute.xlu0 1
  %510 = vperm.xlu0 %509, %v30
  %v511 = vpop.permute.xlu0 %510
  %513 = vset.pattern.permute.xlu0 1
  %514 = vperm.xlu0 %513, %v31
  %v515 = vpop.permute.xlu0 %514
  %517 = vset.pattern.permute.xlu0 1
  %518 = vperm.xlu0 %517, %v32
  %v519 = vpop.permute.xlu0 %518
  %521 = vset.pattern.permute.xlu0 1
  %522 = vperm.xlu0 %521, %v33
  %v523 = vpop.permute.xlu0 %522
  %525 = vset.pattern.permute.xlu0 1
  %526 = vperm.xlu0 %525, %v34
  %v527 = vpop.permute.xlu0 %526
  %529 = vset.pattern.permute.xlu0 1
  %530 = vperm.xlu0 %529, %v35
  %v531 = vpop.permute.xlu0 %530
  %533 = vset.pattern.permute.xlu0 1
  %534 = vperm.xlu0 %533, %v36
  %v535 = vpop.permute.xlu0 %534
  %537 = vset.pattern.permute.xlu0 1
  %538 = vperm.xlu0 %537, %v37
  %v539 = vpop.permute.xlu0 %538
  %541 = vset.pattern.permute.xlu0 1
  %542 = vperm.xlu0 %541, %v38
  %v543 = vpop.permute.xlu0 %542
  %545 = vset.pattern.permute.xlu0 1
  %546 = vperm.xlu0 %545, %v39
  %v547 = vpop.permute.xlu0 %546
  %549 = vset.pattern.permute.xlu0 1
  %550 = vperm.xlu0 %549, %v40
  %v551 = vpop.permute.xlu0 %550
  %553 = vset.pattern.permute.xlu0 1
  %554 = vperm.xlu0 %553, %v41
  %v555 = vpop.permute.xlu0 %554
  %557 = vset.pattern.permute.xlu0 1
  %558 = vperm.xlu0 %557, %v42
  %v559 = vpop.permute.xlu0 %558
  %561 = vset.pattern.permute.xlu0 1
  %562 = vperm.xlu0 %561, %v43
  %v563 = vpop.permute.xlu0 %562
  %565 = vset.pattern.permute.xlu0 1
  %566 = vperm.xlu0 %565, %v44
  %v567 = vpop.permute.xlu0 %566
  %569 = vset.pattern.permute.xlu0 1
  %570 = vperm.xlu0 %569, %v45
  %v571 = vpop.permute.xlu0 %570
  %573 = vset.pattern.permute.xlu0 1
  %574 = vperm.xlu0 %573, %v46
  %v575 = vpop.permute.xlu0 %574
  %577 = vset.pattern.permute.xlu0 1
  %578 = vperm.xlu0 %577, %v47
  %v579 = vpop.permute.xlu0 %578
  %581 = vset.pattern.permute.xlu0 1
  %582 = vperm.xlu0 %581, %v48
  %v583 = vpop.permute.xlu0 %582
  %585 = vset.pattern.permute.xlu0 1
  %586 = vperm.xlu0 %585, %v49
  %v587 = vpop.permute.xlu0 %586
  %589 = vset.pattern.permute.xlu0 1
  %590 = vperm.xlu0 %589, %v50
  %v591 = vpop.permute.xlu0 %590
  %593 = vset.pattern.permute.xlu0 1
  %594 = vperm.xlu0 %593, %v51
  %v595 = vpop.permute.xlu0 %594
  %597 = vset.pattern.permute.xlu0 1
  %598 = vperm.xlu0 %597, %v52
  %v599 = vpop.permute.xlu0 %598
  %v601 = vlaneseq
  %v602 = vshrl.u32 %v601, 7
  %v603 = vsub.s32 1, %v602
  %v604 = vrot.slane %v20, %v603
  %v605 = vmul.f32 %v475, %v604
  %v606 = vmul.f32 %v479, %v604
  %v607 = vmul.f32 %v483, %v604
  %v608 = vmul.f32 %v487, %v604
  %v609 = vmul.f32 %v491, %v604
  %v610 = vmul.f32 %v495, %v604
  %v611 = vmul.f32 %v499, %v604
  %v612 = vmul.f32 %v503, %v604
  %v613 = vmul.f32 %v507, %v604
  %v614 = vmul.f32 %v511, %v604
  %v615 = vmul.f32 %v515, %v604
  %v616 = vmul.f32 %v519, %v604
  %v617 = vmul.f32 %v523, %v604
  %v618 = vmul.f32 %v527, %v604
  %v619 = vmul.f32 %v531, %v604
  %v620 = vmul.f32 %v535, %v604
  %v621 = vmul.f32 %v539, %v604
  %v622 = vmul.f32 %v543, %v604
  %v623 = vmul.f32 %v547, %v604
  %v624 = vmul.f32 %v551, %v604
  %v625 = vmul.f32 %v555, %v604
  %v626 = vmul.f32 %v559, %v604
  %v627 = vmul.f32 %v563, %v604
  %v628 = vmul.f32 %v567, %v604
  %v629 = vmul.f32 %v571, %v604
  %v630 = vmul.f32 %v575, %v604
  %v631 = vmul.f32 %v579, %v604
  %v632 = vmul.f32 %v583, %v604
  %v633 = vmul.f32 %v587, %v604
  %v634 = vmul.f32 %v591, %v604
  %v635 = vmul.f32 %v595, %v604
  %v636 = vmul.f32 %v599, %v604
  %v637 = vadd.f32 %v441, %v605
  %v638 = vadd.f32 %v442, %v606
  %v639 = vadd.f32 %v443, %v607
  %v640 = vadd.f32 %v444, %v608
  %v641 = vadd.f32 %v445, %v609
  %v642 = vadd.f32 %v446, %v610
  %v643 = vadd.f32 %v447, %v611
  %v644 = vadd.f32 %v448, %v612
  %v645 = vadd.f32 %v449, %v613
  %v646 = vadd.f32 %v450, %v614
  %v647 = vadd.f32 %v451, %v615
  %v648 = vadd.f32 %v452, %v616
  %v649 = vadd.f32 %v453, %v617
  %v650 = vadd.f32 %v454, %v618
  %v651 = vadd.f32 %v455, %v619
  %v652 = vadd.f32 %v456, %v620
  %v653 = vadd.f32 %v457, %v621
  %v654 = vadd.f32 %v458, %v622
  %v655 = vadd.f32 %v459, %v623
  %v656 = vadd.f32 %v460, %v624
  %v657 = vadd.f32 %v461, %v625
  %v658 = vadd.f32 %v462, %v626
  %v659 = vadd.f32 %v463, %v627
  %v660 = vadd.f32 %v464, %v628
  %v661 = vadd.f32 %v465, %v629
  %v662 = vadd.f32 %v466, %v630
  %v663 = vadd.f32 %v467, %v631
  %v664 = vadd.f32 %v468, %v632
  %v665 = vadd.f32 %v469, %v633
  %v666 = vadd.f32 %v470, %v634
  %v667 = vadd.f32 %v471, %v635
  %v668 = vadd.f32 %v472, %v636
  %669 = vset.pattern.permute.xlu0 2
  %670 = vperm.xlu0 %669, %v21
  %v671 = vpop.permute.xlu0 %670
  %673 = vset.pattern.permute.xlu0 2
  %674 = vperm.xlu0 %673, %v22
  %v675 = vpop.permute.xlu0 %674
  %677 = vset.pattern.permute.xlu0 2
  %678 = vperm.xlu0 %677, %v23
  %v679 = vpop.permute.xlu0 %678
  %681 = vset.pattern.permute.xlu0 2
  %682 = vperm.xlu0 %681, %v24
  %v683 = vpop.permute.xlu0 %682
  %685 = vset.pattern.permute.xlu0 2
  %686 = vperm.xlu0 %685, %v25
  %v687 = vpop.permute.xlu0 %686
  %689 = vset.pattern.permute.xlu0 2
  %690 = vperm.xlu0 %689, %v26
  %v691 = vpop.permute.xlu0 %690
  %693 = vset.pattern.permute.xlu0 2
  %694 = vperm.xlu0 %693, %v27
  %v695 = vpop.permute.xlu0 %694
  %697 = vset.pattern.permute.xlu0 2
  %698 = vperm.xlu0 %697, %v28
  %v699 = vpop.permute.xlu0 %698
  %701 = vset.pattern.permute.xlu0 2
  %702 = vperm.xlu0 %701, %v29
  %v703 = vpop.permute.xlu0 %702
  %705 = vset.pattern.permute.xlu0 2
  %706 = vperm.xlu0 %705, %v30
  %v707 = vpop.permute.xlu0 %706
  %709 = vset.pattern.permute.xlu0 2
  %710 = vperm.xlu0 %709, %v31
  %v711 = vpop.permute.xlu0 %710
  %713 = vset.pattern.permute.xlu0 2
  %714 = vperm.xlu0 %713, %v32
  %v715 = vpop.permute.xlu0 %714
  %717 = vset.pattern.permute.xlu0 2
  %718 = vperm.xlu0 %717, %v33
  %v719 = vpop.permute.xlu0 %718
  %721 = vset.pattern.permute.xlu0 2
  %722 = vperm.xlu0 %721, %v34
  %v723 = vpop.permute.xlu0 %722
  %725 = vset.pattern.permute.xlu0 2
  %726 = vperm.xlu0 %725, %v35
  %v727 = vpop.permute.xlu0 %726
  %729 = vset.pattern.permute.xlu0 2
  %730 = vperm.xlu0 %729, %v36
  %v731 = vpop.permute.xlu0 %730
  %733 = vset.pattern.permute.xlu0 2
  %734 = vperm.xlu0 %733, %v37
  %v735 = vpop.permute.xlu0 %734
  %737 = vset.pattern.permute.xlu0 2
  %738 = vperm.xlu0 %737, %v38
  %v739 = vpop.permute.xlu0 %738
  %741 = vset.pattern.permute.xlu0 2
  %742 = vperm.xlu0 %741, %v39
  %v743 = vpop.permute.xlu0 %742
  %745 = vset.pattern.permute.xlu0 2
  %746 = vperm.xlu0 %745, %v40
  %v747 = vpop.permute.xlu0 %746
  %749 = vset.pattern.permute.xlu0 2
  %750 = vperm.xlu0 %749, %v41
  %v751 = vpop.permute.xlu0 %750
  %753 = vset.pattern.permute.xlu0 2
  %754 = vperm.xlu0 %753, %v42
  %v755 = vpop.permute.xlu0 %754
  %757 = vset.pattern.permute.xlu0 2
  %758 = vperm.xlu0 %757, %v43
  %v759 = vpop.permute.xlu0 %758
  %761 = vset.pattern.permute.xlu0 2
  %762 = vperm.xlu0 %761, %v44
  %v763 = vpop.permute.xlu0 %762
  %765 = vset.pattern.permute.xlu0 2
  %766 = vperm.xlu0 %765, %v45
  %v767 = vpop.permute.xlu0 %766
  %769 = vset.pattern.permute.xlu0 2
  %770 = vperm.xlu0 %769, %v46
  %v771 = vpop.permute.xlu0 %770
  %773 = vset.pattern.permute.xlu0 2
  %774 = vperm.xlu0 %773, %v47
  %v775 = vpop.permute.xlu0 %774
  %777 = vset.pattern.permute.xlu0 2
  %778 = vperm.xlu0 %777, %v48
  %v779 = vpop.permute.xlu0 %778
  %781 = vset.pattern.permute.xlu0 2
  %782 = vperm.xlu0 %781, %v49
  %v783 = vpop.permute.xlu0 %782
  %785 = vset.pattern.permute.xlu0 2
  %786 = vperm.xlu0 %785, %v50
  %v787 = vpop.permute.xlu0 %786
  %789 = vset.pattern.permute.xlu0 2
  %790 = vperm.xlu0 %789, %v51
  %v791 = vpop.permute.xlu0 %790
  %793 = vset.pattern.permute.xlu0 2
  %794 = vperm.xlu0 %793, %v52
  %v795 = vpop.permute.xlu0 %794
  %v797 = vlaneseq
  %v798 = vshrl.u32 %v797, 7
  %v799 = vsub.s32 2, %v798
  %v800 = vrot.slane %v20, %v799
  %v801 = vmul.f32 %v671, %v800
  %v802 = vmul.f32 %v675, %v800
  %v803 = vmul.f32 %v679, %v800
  %v804 = vmul.f32 %v683, %v800
  %v805 = vmul.f32 %v687, %v800
  %v806 = vmul.f32 %v691, %v800
  %v807 = vmul.f32 %v695, %v800
  %v808 = vmul.f32 %v699, %v800
  %v809 = vmul.f32 %v703, %v800
  %v810 = vmul.f32 %v707, %v800
  %v811 = vmul.f32 %v711, %v800
  %v812 = vmul.f32 %v715, %v800
  %v813 = vmul.f32 %v719, %v800
  %v814 = vmul.f32 %v723, %v800
  %v815 = vmul.f32 %v727, %v800
  %v816 = vmul.f32 %v731, %v800
  %v817 = vmul.f32 %v735, %v800
  %v818 = vmul.f32 %v739, %v800
  %v819 = vmul.f32 %v743, %v800
  %v820 = vmul.f32 %v747, %v800
  %v821 = vmul.f32 %v751, %v800
  %v822 = vmul.f32 %v755, %v800
  %v823 = vmul.f32 %v759, %v800
  %v824 = vmul.f32 %v763, %v800
  %v825 = vmul.f32 %v767, %v800
  %v826 = vmul.f32 %v771, %v800
  %v827 = vmul.f32 %v775, %v800
  %v828 = vmul.f32 %v779, %v800
  %v829 = vmul.f32 %v783, %v800
  %v830 = vmul.f32 %v787, %v800
  %v831 = vmul.f32 %v791, %v800
  %v832 = vmul.f32 %v795, %v800
  %v833 = vadd.f32 %v637, %v801
  %v834 = vadd.f32 %v638, %v802
  %v835 = vadd.f32 %v639, %v803
  %v836 = vadd.f32 %v640, %v804
  %v837 = vadd.f32 %v641, %v805
  %v838 = vadd.f32 %v642, %v806
  %v839 = vadd.f32 %v643, %v807
  %v840 = vadd.f32 %v644, %v808
  %v841 = vadd.f32 %v645, %v809
  %v842 = vadd.f32 %v646, %v810
  %v843 = vadd.f32 %v647, %v811
  %v844 = vadd.f32 %v648, %v812
  %v845 = vadd.f32 %v649, %v813
  %v846 = vadd.f32 %v650, %v814
  %v847 = vadd.f32 %v651, %v815
  %v848 = vadd.f32 %v652, %v816
  %v849 = vadd.f32 %v653, %v817
  %v850 = vadd.f32 %v654, %v818
  %v851 = vadd.f32 %v655, %v819
  %v852 = vadd.f32 %v656, %v820
  %v853 = vadd.f32 %v657, %v821
  %v854 = vadd.f32 %v658, %v822
  %v855 = vadd.f32 %v659, %v823
  %v856 = vadd.f32 %v660, %v824
  %v857 = vadd.f32 %v661, %v825
  %v858 = vadd.f32 %v662, %v826
  %v859 = vadd.f32 %v663, %v827
  %v860 = vadd.f32 %v664, %v828
  %v861 = vadd.f32 %v665, %v829
  %v862 = vadd.f32 %v666, %v830
  %v863 = vadd.f32 %v667, %v831
  %v864 = vadd.f32 %v668, %v832
  %865 = vset.pattern.permute.xlu0 3
  %866 = vperm.xlu0 %865, %v21
  %v867 = vpop.permute.xlu0 %866
  %869 = vset.pattern.permute.xlu0 3
  %870 = vperm.xlu0 %869, %v22
  %v871 = vpop.permute.xlu0 %870
  %873 = vset.pattern.permute.xlu0 3
  %874 = vperm.xlu0 %873, %v23
  %v875 = vpop.permute.xlu0 %874
  %877 = vset.pattern.permute.xlu0 3
  %878 = vperm.xlu0 %877, %v24
  %v879 = vpop.permute.xlu0 %878
  %881 = vset.pattern.permute.xlu0 3
  %882 = vperm.xlu0 %881, %v25
  %v883 = vpop.permute.xlu0 %882
  %885 = vset.pattern.permute.xlu0 3
  %886 = vperm.xlu0 %885, %v26
  %v887 = vpop.permute.xlu0 %886
  %889 = vset.pattern.permute.xlu0 3
  %890 = vperm.xlu0 %889, %v27
  %v891 = vpop.permute.xlu0 %890
  %893 = vset.pattern.permute.xlu0 3
  %894 = vperm.xlu0 %893, %v28
  %v895 = vpop.permute.xlu0 %894
  %897 = vset.pattern.permute.xlu0 3
  %898 = vperm.xlu0 %897, %v29
  %v899 = vpop.permute.xlu0 %898
  %901 = vset.pattern.permute.xlu0 3
  %902 = vperm.xlu0 %901, %v30
  %v903 = vpop.permute.xlu0 %902
  %905 = vset.pattern.permute.xlu0 3
  %906 = vperm.xlu0 %905, %v31
  %v907 = vpop.permute.xlu0 %906
  %909 = vset.pattern.permute.xlu0 3
  %910 = vperm.xlu0 %909, %v32
  %v911 = vpop.permute.xlu0 %910
  %913 = vset.pattern.permute.xlu0 3
  %914 = vperm.xlu0 %913, %v33
  %v915 = vpop.permute.xlu0 %914
  %917 = vset.pattern.permute.xlu0 3
  %918 = vperm.xlu0 %917, %v34
  %v919 = vpop.permute.xlu0 %918
  %921 = vset.pattern.permute.xlu0 3
  %922 = vperm.xlu0 %921, %v35
  %v923 = vpop.permute.xlu0 %922
  %925 = vset.pattern.permute.xlu0 3
  %926 = vperm.xlu0 %925, %v36
  %v927 = vpop.permute.xlu0 %926
  %929 = vset.pattern.permute.xlu0 3
  %930 = vperm.xlu0 %929, %v37
  %v931 = vpop.permute.xlu0 %930
  %933 = vset.pattern.permute.xlu0 3
  %934 = vperm.xlu0 %933, %v38
  %v935 = vpop.permute.xlu0 %934
  %937 = vset.pattern.permute.xlu0 3
  %938 = vperm.xlu0 %937, %v39
  %v939 = vpop.permute.xlu0 %938
  %941 = vset.pattern.permute.xlu0 3
  %942 = vperm.xlu0 %941, %v40
  %v943 = vpop.permute.xlu0 %942
  %945 = vset.pattern.permute.xlu0 3
  %946 = vperm.xlu0 %945, %v41
  %v947 = vpop.permute.xlu0 %946
  %949 = vset.pattern.permute.xlu0 3
  %950 = vperm.xlu0 %949, %v42
  %v951 = vpop.permute.xlu0 %950
  %953 = vset.pattern.permute.xlu0 3
  %954 = vperm.xlu0 %953, %v43
  %v955 = vpop.permute.xlu0 %954
  %957 = vset.pattern.permute.xlu0 3
  %958 = vperm.xlu0 %957, %v44
  %v959 = vpop.permute.xlu0 %958
  %961 = vset.pattern.permute.xlu0 3
  %962 = vperm.xlu0 %961, %v45
  %v963 = vpop.permute.xlu0 %962
  %965 = vset.pattern.permute.xlu0 3
  %966 = vperm.xlu0 %965, %v46
  %v967 = vpop.permute.xlu0 %966
  %969 = vset.pattern.permute.xlu0 3
  %970 = vperm.xlu0 %969, %v47
  %v971 = vpop.permute.xlu0 %970
  %973 = vset.pattern.permute.xlu0 3
  %974 = vperm.xlu0 %973, %v48
  %v975 = vpop.permute.xlu0 %974
  %977 = vset.pattern.permute.xlu0 3
  %978 = vperm.xlu0 %977, %v49
  %v979 = vpop.permute.xlu0 %978
  %981 = vset.pattern.permute.xlu0 3
  %982 = vperm.xlu0 %981, %v50
  %v983 = vpop.permute.xlu0 %982
  %985 = vset.pattern.permute.xlu0 3
  %986 = vperm.xlu0 %985, %v51
  %v987 = vpop.permute.xlu0 %986
  %989 = vset.pattern.permute.xlu0 3
  %990 = vperm.xlu0 %989, %v52
  %v991 = vpop.permute.xlu0 %990
  %v993 = vlaneseq
  %v994 = vshrl.u32 %v993, 7
  %v995 = vsub.s32 3, %v994
  %v996 = vrot.slane %v20, %v995
  %v997 = vmul.f32 %v867, %v996
  %v998 = vmul.f32 %v871, %v996
  %v999 = vmul.f32 %v875, %v996
  %v1000 = vmul.f32 %v879, %v996
  %v1001 = vmul.f32 %v883, %v996
  %v1002 = vmul.f32 %v887, %v996
  %v1003 = vmul.f32 %v891, %v996
  %v1004 = vmul.f32 %v895, %v996
  %v1005 = vmul.f32 %v899, %v996
  %v1006 = vmul.f32 %v903, %v996
  %v1007 = vmul.f32 %v907, %v996
  %v1008 = vmul.f32 %v911, %v996
  %v1009 = vmul.f32 %v915, %v996
  %v1010 = vmul.f32 %v919, %v996
  %v1011 = vmul.f32 %v923, %v996
  %v1012 = vmul.f32 %v927, %v996
  %v1013 = vmul.f32 %v931, %v996
  %v1014 = vmul.f32 %v935, %v996
  %v1015 = vmul.f32 %v939, %v996
  %v1016 = vmul.f32 %v943, %v996
  %v1017 = vmul.f32 %v947, %v996
  %v1018 = vmul.f32 %v951, %v996
  %v1019 = vmul.f32 %v955, %v996
  %v1020 = vmul.f32 %v959, %v996
  %v1021 = vmul.f32 %v963, %v996
  %v1022 = vmul.f32 %v967, %v996
  %v1023 = vmul.f32 %v971, %v996
  %v1024 = vmul.f32 %v975, %v996
  %v1025 = vmul.f32 %v979, %v996
  %v1026 = vmul.f32 %v983, %v996
  %v1027 = vmul.f32 %v987, %v996
  %v1028 = vmul.f32 %v991, %v996
  %v1029 = vadd.f32 %v833, %v997
  %v1030 = vadd.f32 %v834, %v998
  %v1031 = vadd.f32 %v835, %v999
  %v1032 = vadd.f32 %v836, %v1000
  %v1033 = vadd.f32 %v837, %v1001
  %v1034 = vadd.f32 %v838, %v1002
  %v1035 = vadd.f32 %v839, %v1003
  %v1036 = vadd.f32 %v840, %v1004
  %v1037 = vadd.f32 %v841, %v1005
  %v1038 = vadd.f32 %v842, %v1006
  %v1039 = vadd.f32 %v843, %v1007
  %v1040 = vadd.f32 %v844, %v1008
  %v1041 = vadd.f32 %v845, %v1009
  %v1042 = vadd.f32 %v846, %v1010
  %v1043 = vadd.f32 %v847, %v1011
  %v1044 = vadd.f32 %v848, %v1012
  %v1045 = vadd.f32 %v849, %v1013
  %v1046 = vadd.f32 %v850, %v1014
  %v1047 = vadd.f32 %v851, %v1015
  %v1048 = vadd.f32 %v852, %v1016
  %v1049 = vadd.f32 %v853, %v1017
  %v1050 = vadd.f32 %v854, %v1018
  %v1051 = vadd.f32 %v855, %v1019
  %v1052 = vadd.f32 %v856, %v1020
  %v1053 = vadd.f32 %v857, %v1021
  %v1054 = vadd.f32 %v858, %v1022
  %v1055 = vadd.f32 %v859, %v1023
  %v1056 = vadd.f32 %v860, %v1024
  %v1057 = vadd.f32 %v861, %v1025
  %v1058 = vadd.f32 %v862, %v1026
  %v1059 = vadd.f32 %v863, %v1027
  %v1060 = vadd.f32 %v864, %v1028
  %v1061 = vmax.f32 %v1029, 0.0
  %v1062 = vmax.f32 %v1030, 0.0
  %v1063 = vmax.f32 %v1031, 0.0
  %v1064 = vmax.f32 %v1032, 0.0
  %v1065 = vmax.f32 %v1033, 0.0
  %v1066 = vmax.f32 %v1034, 0.0
  %v1067 = vmax.f32 %v1035, 0.0
  %v1068 = vmax.f32 %v1036, 0.0
  %v1069 = vmax.f32 %v1037, 0.0
  %v1070 = vmax.f32 %v1038, 0.0
  %v1071 = vmax.f32 %v1039, 0.0
  %v1072 = vmax.f32 %v1040, 0.0
  %v1073 = vmax.f32 %v1041, 0.0
  %v1074 = vmax.f32 %v1042, 0.0
  %v1075 = vmax.f32 %v1043, 0.0
  %v1076 = vmax.f32 %v1044, 0.0
  %v1077 = vmax.f32 %v1045, 0.0
  %v1078 = vmax.f32 %v1046, 0.0
  %v1079 = vmax.f32 %v1047, 0.0
  %v1080 = vmax.f32 %v1048, 0.0
  %v1081 = vmax.f32 %v1049, 0.0
  %v1082 = vmax.f32 %v1050, 0.0
  %v1083 = vmax.f32 %v1051, 0.0
  %v1084 = vmax.f32 %v1052, 0.0
  %v1085 = vmax.f32 %v1053, 0.0
  %v1086 = vmax.f32 %v1054, 0.0
  %v1087 = vmax.f32 %v1055, 0.0
  %v1088 = vmax.f32 %v1056, 0.0
  %v1089 = vmax.f32 %v1057, 0.0
  %v1090 = vmax.f32 %v1058, 0.0
  %v1091 = vmax.f32 %v1059, 0.0
  %v1092 = vmax.f32 %v1060, 0.0
  %v1093 = vld [vmem:[%s3] sm:$0xff]
  %v1094 = vld [vmem:[%s3 + $0x8] sm:$0xff]
  %v1095 = vld [vmem:[%s4] sm:$0xff]
  %1097 = vset.pattern.permute.xlu0 0
  %1098 = vperm.xlu0 %1097, %v1095
  %v1099 = vpop.permute.xlu0 %1098
  %1101 = vmatprep.subr.mxu0 0.0
  %1102 = vmatpush1.msra.mxu0 %v1061
  %1103 = vmatprep.subr.mxu0 0.0
  %1104 = vmatpush1.msra.mxu0 %v1062
  %1105 = vmatprep.subr.mxu0 0.0
  %1106 = vmatpush1.msra.mxu0 %v1063
  %1107 = vmatprep.subr.mxu0 0.0
  %1108 = vmatpush1.msra.mxu0 %v1064
  %1109 = vmatprep.subr.mxu0 0.0
  %1110 = vmatpush1.msra.mxu0 %v1065
  %1111 = vmatprep.subr.mxu0 0.0
  %1112 = vmatpush1.msra.mxu0 %v1066
  %1113 = vmatprep.subr.mxu0 0.0
  %1114 = vmatpush1.msra.mxu0 %v1067
  %1115 = vmatprep.subr.mxu0 0.0
  %1116 = vmatpush1.msra.mxu0 %v1068
  %1117 = vmatprep.subr.mxu0 0.0
  %1118 = vmatpush1.msra.mxu0 %v1069
  %1119 = vmatprep.subr.mxu0 0.0
  %1120 = vmatpush1.msra.mxu0 %v1070
  %1121 = vmatprep.subr.mxu0 0.0
  %1122 = vmatpush1.msra.mxu0 %v1071
  %1123 = vmatprep.subr.mxu0 0.0
  %1124 = vmatpush1.msra.mxu0 %v1072
  %1125 = vmatprep.subr.mxu0 0.0
  %1126 = vmatpush1.msra.mxu0 %v1073
  %1127 = vmatprep.subr.mxu0 0.0
  %1128 = vmatpush1.msra.mxu0 %v1074
  %1129 = vmatprep.subr.mxu0 0.0
  %1130 = vmatpush1.msra.mxu0 %v1075
  %1131 = vmatprep.subr.mxu0 0.0
  %1132 = vmatpush1.msra.mxu0 %v1076
  %1133 = vmatprep.subr.mxu0 0.0
  %1134 = vmatpush1.msra.mxu0 %v1077
  %1135 = vmatprep.subr.mxu0 0.0
  %1136 = vmatpush1.msra.mxu0 %v1078
  %1137 = vmatprep.subr.mxu0 0.0
  %1138 = vmatpush1.msra.mxu0 %v1079
  %1139 = vmatprep.subr.mxu0 0.0
  %1140 = vmatpush1.msra.mxu0 %v1080
  %1141 = vmatprep.subr.mxu0 0.0
  %1142 = vmatpush1.msra.mxu0 %v1081
  %1143 = vmatprep.subr.mxu0 0.0
  %1144 = vmatpush1.msra.mxu0 %v1082
  %1145 = vmatprep.subr.mxu0 0.0
  %1146 = vmatpush1.msra.mxu0 %v1083
  %1147 = vmatprep.subr.mxu0 0.0
  %1148 = vmatpush1.msra.mxu0 %v1084
  %1149 = vmatprep.subr.mxu0 0.0
  %1150 = vmatpush1.msra.mxu0 %v1085
  %1151 = vmatprep.subr.mxu0 0.0
  %1152 = vmatpush1.msra.mxu0 %v1086
  %1153 = vmatprep.subr.mxu0 0.0
  %1154 = vmatpush1.msra.mxu0 %v1087
  %1155 = vmatprep.subr.mxu0 0.0
  %1156 = vmatpush1.msra.mxu0 %v1088
  %1157 = vmatprep.subr.mxu0 0.0
  %1158 = vmatpush1.msra.mxu0 %v1089
  %1159 = vmatprep.subr.mxu0 0.0
  %1160 = vmatpush1.msra.mxu0 %v1090
  %1161 = vmatprep.subr.mxu0 0.0
  %1162 = vmatpush1.msra.mxu0 %v1091
  %1163 = vmatprep.subr.mxu0 0.0
  %1164 = vmatpush1.msra.mxu0 %v1092
  %1165 = vmatprep.mubr.f32.mxu0 %v1094
  %1166 = vmatmul.mubr.f32.gmra.mrb[0].mxu0 %v1093
  %v1167 = vpop.f32.mrb[0].mxu0
  %v1168 = vadd.f32 %v1099, %v1167
  %v1169 = vpop.f32.mrb[0].mxu0
  %1170 = vdwg.mxu0
  %1171 = vst [vmem:[%s5] sm:$0xff] %v1168
  // Predicated region
  $region22: #{policy_forward.1} parent=0 // pred_check
    _
  $region23: #{policy_forward.1} parent=0 // pred_check_branch
    %1173 = sbr.rel (0) target = $region25
  $region24: #{policy_forward.1} parent=0 // pred_region
    _
  $region25: #{policy_forward.1} parent=0 // pred_fallthru
    _
  // Predicated region
  $region26: #{policy_forward.1} parent=0 // pred_check
    _
  $region27: #{policy_forward.1} parent=0 // pred_check_branch
    %1175 = sbr.rel (0) target = $region29
  $region28: #{policy_forward.1} parent=0 // pred_region
    _
  $region29: #{policy_forward.1} parent=0 // pred_fallthru
    _

</llo_original>
